<compile_context>
chip_gen: v5e
topology: v5e:2x2
jax: 0.10.0
libtpu: 0.0.40
codegen_flags: <defaults>
</compile_context>

<pallas_src>
import functools
import math

import jax
import jax.numpy as jnp
from jax.experimental import pallas as pl
from jax.experimental.pallas import tpu as pltpu


def _posemb_kernel(offset_ref, out_ref, *, f: int, neg_log_scale: float):
    # offset_ref: (1,) f32 in SMEM (scalar prefetch)
    # out_ref:    (TS, 2F) in VMEM (last dim = full array extent)
    ts, two_f = out_ref.shape

    # Frequency + quarter-phase rows, (1, 2F):
    #   lanes [0, F)  -> freq = inv_freq[lane],       shift = 0        (sin half)
    #   lanes [F, 2F) -> freq = inv_freq[lane - F],   shift = pi/2     (cos half)
    lane = jax.lax.broadcasted_iota(jnp.int32, (1, two_f), dimension=1)
    is_sin = lane < f
    k = jnp.where(is_sin, lane, lane - f).astype(jnp.float32)
    freq = jnp.exp(k * neg_log_scale)            # = 1 / 10000 ** (3k / dim)
    shift = jnp.where(is_sin, jnp.float32(0.0), jnp.float32(math.pi / 2.0))

    # Positions for this tile as a (TS, 1) column: t = tile_start + row + offset.
    row = jax.lax.broadcasted_iota(jnp.int32, (ts, 1), dimension=0)
    start = pl.program_id(0) * ts
    t = (row + start).astype(jnp.float32) + offset_ref[0]

    # Single transcendental per element: sin(x + pi/2) == cos(x).
    phases = t * freq + shift                    # (TS, 2F) via broadcast
    out_ref[...] = jnp.sin(phases).astype(out_ref.dtype)


def fixed_3d_positional_embedding(x, dim, seq_dim=1, offset=0.0, *,
                                  tile_s=None, out_dtype=jnp.float32,
                                  vmem_budget_bytes=8 << 20):
    """Pallas equivalent of Fixed3DPositionalEmbedding(dim).forward(x, seq_dim, offset)."""
    S = x.shape[seq_dim]
    F = (dim + 2) // 3                       # == len(range(0, dim, 3))
    two_f = 2 * F

    itemsize = jnp.dtype(out_dtype).itemsize
    sublane = 16 if itemsize < 4 else 8      # bf16 packs (16, 128) per vreg
    lane_pad = ((two_f + 127) // 128) * 128  # VMEM footprint per row (lane-padded)
    row_bytes = lane_pad * itemsize

    # Tile the sequence axis from a VMEM byte budget (double-buffered output).
    if tile_s is None:
        tile_s = max(sublane, vmem_budget_bytes // (2 * row_bytes))
    ts = min(int(tile_s), S)
    if ts != S:
        ts = max(sublane, (ts // sublane) * sublane)
    grid = (pl.cdiv(S, ts),)

    neg_log_scale = -3.0 * math.log(10000.0) / float(dim)
    kernel = functools.partial(_posemb_kernel, f=F, neg_log_scale=neg_log_scale)

    tile_bytes = ts * row_bytes
    vmem_limit = min(max(4 * tile_bytes, 4 << 20), 48 << 20)   # v7x-safe clamp

    emb = pl.pallas_call(
        kernel,
        out_shape=jax.ShapeDtypeStruct((S, two_f), out_dtype),
        grid_spec=pltpu.PrefetchScalarGridSpec(
            num_scalar_prefetch=1,           # offset lives in SMEM
            grid=grid,
            in_specs=[],
            out_specs=pl.BlockSpec((ts, two_f), lambda i, offset_ref: (i, 0)),
        ),
        compiler_params=pltpu.CompilerParams(
            dimension_semantics=("parallel",),
            vmem_limit_bytes=vmem_limit,
        ),
    )(jnp.asarray([offset], dtype=jnp.float32))

    # Free reshape to the module's (1, S, 2F) layout (no data movement pass).
    return emb[None, :, :]


def _reference(x, dim, seq_dim=1, offset=0.0):
    inv_freq = 1.0 / (10000.0 ** (jnp.arange(0, dim, 3, dtype=jnp.float32) / dim))
    t = jnp.arange(x.shape[seq_dim], dtype=jnp.float32) + offset
    sinusoid = t[:, None] * inv_freq[None, :]
    emb = jnp.concatenate([jnp.sin(sinusoid), jnp.cos(sinusoid)], axis=-1)
    return emb[None, :, :]


if __name__ == "__main__":
    key = jax.random.PRNGKey(0)
    dim = 32                        # -> F = ceil(32/3) = 11, 2F = 22
    B, S = 2, 8
    x = jax.random.normal(key, (B, S, dim), dtype=jnp.float32)   # only shape is used

    out = jax.block_until_ready(
        fixed_3d_positional_embedding(x, dim, seq_dim=1, offset=0))
    ref = _reference(x, dim, seq_dim=1, offset=0)
    assert out.shape == (1, S, 2 * ((dim + 2) // 3)), out.shape
    assert jnp.allclose(out, ref, atol=1e-4, rtol=1e-4), "mismatch (S=8, offset=0)"

    # Tiled path (3 grid steps), nonzero offset through the SMEM scalar.
    S2 = 48
    x2 = jax.random.normal(key, (B, S2, dim), dtype=jnp.float32)
    out2 = jax.block_until_ready(
        fixed_3d_positional_embedding(x2, dim, seq_dim=1, offset=3, tile_s=16))
    ref2 = _reference(x2, dim, seq_dim=1, offset=3)
    assert out2.shape == ref2.shape, out2.shape
    assert jnp.allclose(out2, ref2, atol=1e-4, rtol=1e-4), "mismatch (S=48 tiled, offset=3)"

    # Non-divisible S: partial last block (Pallas masks the out-of-range rows).
    S3 = 20
    x3 = jax.random.normal(key, (B, S3, dim), dtype=jnp.float32)
    out3 = jax.block_until_ready(
        fixed_3d_positional_embedding(x3, dim, seq_dim=1, offset=1.5, tile_s=16))
    ref3 = _reference(x3, dim, seq_dim=1, offset=1.5)
    assert out3.shape == ref3.shape, out3.shape
    assert jnp.allclose(out3, ref3, atol=1e-4, rtol=1e-4), "mismatch (S=20 partial block)"

    # Optional bf16 write-back path (sublane rounding = 16), looser tolerance.
    out_bf = jax.block_until_ready(
        fixed_3d_positional_embedding(x2, dim, seq_dim=1, offset=3,
                                      tile_s=16, out_dtype=jnp.bfloat16))
    assert jnp.allclose(out_bf.astype(jnp.float32), ref2, atol=2e-2, rtol=2e-2), \
        "mismatch (bf16 output)"

    print("KERNEL_OK")
</pallas_src>

<mosaic_0001>
module attributes {stable_mosaic.version = 11 : i64} {
  func.func @_posemb_kernel(%arg0: i32, %arg1: memref<1xf32, #tpu.memory_space<smem>>, %arg2: memref<8x22xf32, #tpu.memory_space<vmem>>) attributes {dimension_semantics = [#tpu.dimension_semantics<parallel>], iteration_bounds = array<i64: 1>, scalar_prefetch = 1 : i64, scratch_operands = 0 : i64, tpu.core_type = #tpu.core_type<tc>, window_params = [{transform_indices = @transform_0, window_bounds = array<i64: 8, 22>}]} {
    %0 = tpu.iota {dimensions = array<i32: 1>} : vector<1x22xi32>
    %c11_i32 = arith.constant 11 : i32
    %1 = vector.broadcast %c11_i32 : i32 to vector<1x22xi32>
    %2 = arith.cmpi slt, %0, %1 : vector<1x22xi32>
    %c11_i32_0 = arith.constant 11 : i32
    %3 = vector.broadcast %c11_i32_0 : i32 to vector<1x22xi32>
    %4 = arith.subi %0, %3 : vector<1x22xi32>
    %5 = arith.select %2, %0, %4 : vector<1x22xi1>, vector<1x22xi32>
    %6 = arith.sitofp %5 : vector<1x22xi32> to vector<1x22xf32>
    %cst = arith.constant -0.863469421 : f32
    %7 = vector.broadcast %cst : f32 to vector<1x22xf32>
    %8 = arith.mulf %6, %7 : vector<1x22xf32>
    %9 = math.exp %8 : vector<1x22xf32>
    %cst_1 = arith.constant 0.000000e+00 : f32
    %cst_2 = arith.constant 1.57079637 : f32
    %10 = vector.broadcast %cst_1 : f32 to vector<1x22xf32>
    %11 = vector.broadcast %cst_2 : f32 to vector<1x22xf32>
    %12 = arith.select %2, %10, %11 : vector<1x22xi1>, vector<1x22xf32>
    %13 = tpu.iota {dimensions = array<i32: 0>} : vector<8x1xi32>
    %c8_i32 = arith.constant 8 : i32
    %14 = arith.muli %arg0, %c8_i32 : i32
    %15 = vector.broadcast %14 : i32 to vector<8x1xi32>
    %16 = arith.addi %13, %15 : vector<8x1xi32>
    %17 = arith.sitofp %16 : vector<8x1xi32> to vector<8x1xf32>
    %c0 = arith.constant 0 : index
    %18 = memref.load %arg1[%c0] : memref<1xf32, #tpu.memory_space<smem>>
    %19 = vector.broadcast %18 : f32 to vector<8x1xf32>
    %20 = arith.addf %17, %19 : vector<8x1xf32>
    %21 = vector.broadcast %20 : vector<8x1xf32> to vector<8x22xf32>
    %22 = vector.broadcast %9 : vector<1x22xf32> to vector<8x22xf32>
    %23 = arith.mulf %21, %22 : vector<8x22xf32>
    %24 = vector.broadcast %12 : vector<1x22xf32> to vector<8x22xf32>
    %25 = arith.addf %23, %24 : vector<8x22xf32>
    %26 = math.sin %25 : vector<8x22xf32>
    %c0_3 = arith.constant 0 : index
    %c0_4 = arith.constant 0 : index
    %27 = vector.load %arg2[%c0_3, %c0_4] : memref<8x22xf32, #tpu.memory_space<vmem>>, vector<8x22xf32>
    tpu.vector_store %arg2[%c0_3, %c0_4], %26 {strides = array<i32>} : memref<8x22xf32, #tpu.memory_space<vmem>>, vector<8x22xf32>,
    return
  }
  func.func @transform_0(%arg0: i32, %arg1: memref<1xf32, #tpu.memory_space<smem>>) -> (i32, i32) {
    %c0_i32 = arith.constant 0 : i32
    %c0_i32_0 = arith.constant 0 : i32
    return %arg0, %c0_i32 : i32, i32
  }
}

</mosaic_0001>

<llo_original>
// kernel: tpu_custom_call.1
$region0: #{tpu_custom_call.1}
  #allocation0 [shape = 'u32[]', space=smem, size = 0x4, offset = 0x4, fixed_abs, tag = 'smem constant byte address 0x4 - core index']
  #allocation1 [shape = 'u32[72,128]{1,0:T(1,128)}', space=vmem, size = 0x9000, scoped, tag = 'internal scratch']
  #allocation2 [shape = 's32[1]{0}', space=sflag, size = 0x4, scoped, tag = 'scoped memory for tpu_custom_call.1']
  #allocation3 [shape = 'f32[1]{0:T(128)S(6)}', space=smem, size = 0x200, scoped, tag = 'prefetched SMEM operand 0']
  %s0 = inlined_call_operand.<no memory space> [shape: f32[1], index: 0, kind: input, shape index: {}]
  %s1 = inlined_call_operand.hbm [shape: f32[8,22], index: 1, kind: output, shape index: {}]
  %s2 = sld [smem:[#allocation0]]
  $region10: #{tpu_custom_call.1} parent=0
    _
  %s4 = ssub.s32 1, %s2
  %s5 = scalar_select 0, %s4, %s2
  %6 = sst [smem:[#allocation3]] %s0
  $region1: #{tpu_custom_call.1} parent=0
    #allocation4 [shape = 'u8[4096]{0}', space=vmem, size = 0x1000, scoped, tag = 'output window, operand 0, single buffered']
    #allocation5 [shape = 's32[1]{0}', space=sflag, size = 0x4, scoped, tag = 'scoped memory for tpu_custom_call.1']
    %7 = vsyncpa [#allocation5], 0
    %v8 = vlaneseq
    %v9 = vand.u32 %v8, 127
    %vm10 = vcmp.lt.s32.totalorder %v9, 11
    %v11 = vsub.s32 %v9, 11
    %v12 = vsel %vm10, %v9, %v11
    %v13 = vcvt.s32.f32 %v12
    %v14 = vmul.f32 %v13, -0.8634694
    %v15 = vmul.f32 %v14, 1.442695
    %v16 = vpow.pop %v15
    %v17 = vsel %vm10, 0.0, 1.5707964
    %v18 = vlaneseq
    %v19 = vshrl.u32 %v18, 7
    %s20 = smul.u32 0, 8
    %v21 = vstv %s20
    %v22 = vadd.s32 %v19, %v21
    %v23 = vcvt.s32.f32 %v22
    %s24 = sld [smem:[#allocation3]]
    %v25 = vstv %s24
    %v26 = vadd.f32 %v23, %v25
    %v27 = vmul.f32 %v26, %v16
    %v28 = vadd.f32 %v27, %v17
    %v29 = vand.u32 2147483647, %v28
    %vm30 = vcmp.le.f32.partialorder %v29, 0.7853982
    %vm31 = vcmp.lt.s32.totalorder %v28, 0
    %v32 = vand.u32 %v28, 2139095040
    %v33 = vshrl.u32 %v32, 23
    %v34 = vsub.s32 %v33, 127
    %v35 = vand.u32 2147483647, %v28
    %v36 = vand.u32 %v35, 8388607
    %v37 = vor.u32 %v36, 8388608
    %v38 = vsub.s32 0, %v37
    %v39 = vadd.s32 %v34, 1
    %vm40 = vcmp.gt.s32.totalorder %v39, 0
    %v41 = vsel %vm40, %v39, 0
    %v42 = vshrl.u32 %v41, 5
    %v43 = vand.u32 %v41, 31
    %v44 = vsub.s32 32, %v43
    %v45 = vshrl.u32 683565275, %v44
    %v46 = vshll.u32 683565275, %v43
    %v47 = vshrl.u32 2475754826, %v44
    %v48 = vor.u32 %v46, %v47
    %v49 = vshll.u32 2475754826, %v43
    %v50 = vshrl.u32 2131351028, %v44
    %v51 = vor.u32 %v49, %v50
    %v52 = vshll.u32 2131351028, %v43
    %v53 = vshrl.u32 2102212464, %v44
    %v54 = vor.u32 %v52, %v53
    %v55 = vshll.u32 2102212464, %v43
    %v56 = vshrl.u32 920167782, %v44
    %v57 = vor.u32 %v55, %v56
    %v58 = vshll.u32 920167782, %v43
    %v59 = vshrl.u32 1326507024, %v44
    %v60 = vor.u32 %v58, %v59
    %vm61 = vcmp.lt.s32.totalorder %v42, 1
    %vm62 = vcmp.lt.s32.totalorder %v42, 2
    %vm63 = vcmp.lt.s32.totalorder %v42, 3
    %vm64 = vcmp.lt.s32.totalorder %v42, 4
    %v65 = vsel %vm61, %v45, %v48
    %v66 = vsel %vm64, %v54, 2102212464
    %v67 = vsel %vm63, %v51, %v66
    %v68 = vsel %vm62, %v65, %v67
    %v69 = vsel %vm61, %v48, %v51
    %v70 = vsel %vm64, %v57, 920167782
    %v71 = vsel %vm63, %v54, %v70
    %v72 = vsel %vm62, %v69, %v71
    %v73 = vsel %vm61, %v51, %v54
    %v74 = vsel %vm64, %v60, 1326507024
    %v75 = vsel %vm63, %v57, %v74
    %v76 = vsel %vm62, %v73, %v75
    %v77 = vshll.u32 %v37, 8
    %v78 = vand.u32 %v77, 65535
    %v79 = vshrl.u32 %v77, 16
    %v80 = vand.u32 %v76, 65535
    %v81 = vshrl.u32 %v76, 16
    %v82 = vmul.u32 %v78, %v80
    %v83 = vmul.u32 %v78, %v81
    %v84 = vmul.u32 %v79, %v80
    %v85 = vmul.u32 %v79, %v81
    %v86 = vshll.u32 %v83, 16
    %v87 = vshrl.u32 %v83, 16
    %v88 = vshll.u32 %v84, 16
    %v89 = vshrl.u32 %v84, 16
    %vm90 = vc.u32 %v82, %v86
    %v91 = vsel %vm90, 1, 0
    %v92 = vadd.s32 %v82, %v86
    %v93 = vadd.s32 %v85, %v91
    %vm94 = vc.u32 %v92, %v88
    %v95 = vsel %vm94, 1, 0
    %v96 = vadd.s32 %v92, %v88
    %v97 = vadd.s32 %v93, %v95
    %v98 = vadd.s32 %v97, %v87
    %v99 = vadd.s32 %v98, %v89
    %v100 = vand.u32 %v77, 65535
    %v101 = vshrl.u32 %v77, 16
    %v102 = vand.u32 %v72, 65535
    %v103 = vshrl.u32 %v72, 16
    %v104 = vmul.u32 %v100, %v102
    %v105 = vmul.u32 %v100, %v103
    %v106 = vmul.u32 %v101, %v102
    %v107 = vmul.u32 %v101, %v103
    %v108 = vshll.u32 %v105, 16
    %v109 = vshrl.u32 %v105, 16
    %v110 = vshll.u32 %v106, 16
    %v111 = vshrl.u32 %v106, 16
    %vm112 = vc.u32 %v104, %v108
    %v113 = vsel %vm112, 1, 0
    %v114 = vadd.s32 %v104, %v108
    %v115 = vadd.s32 %v107, %v113
    %vm116 = vc.u32 %v114, %v110
    %v117 = vsel %vm116, 1, 0
    %v118 = vadd.s32 %v114, %v110
    %v119 = vadd.s32 %v115, %v117
    %v120 = vadd.s32 %v119, %v109
    %v121 = vadd.s32 %v120, %v111
    %v122 = vmul.u32 %v77, %v68
    %v123 = vadd.s32 %v99, %v118
    %vm124 = vc.u32 %v99, %v118
    %v125 = vadd.s32 %v121, 1
    %v126 = vsel %vm124, %v125, %v121
    %v127 = vadd.s32 %v122, %v126
    %v128 = vadd.s32 %v127, 536870912
    %v129 = vshrl.u32 %v128, 30
    %v130 = vshll.u32 %v129, 30
    %v131 = vsub.s32 %v127, %v130
    %vm132 = vcmp.lt.s32.totalorder %v131, 0
    %v133 = vsub.s32 0, %v131
    %v134 = vsel %vm132, %v133, %v131
    %v135 = vclz %v134
    %v136 = vsub.s32 %v135, 2
    %vm137 = vcmp.gt.s32.totalorder 0, %v136
    %v138 = vsel %vm137, 0, %v136
    %v139 = vsub.s32 32, %v138
    %v140 = vshll.u32 %v131, %v138
    %v141 = vshrl.u32 %v123, %v139
    %v142 = vor.u32 %v140, %v141
    %v143 = vsub.s32 4294967266, %v138
    %v144 = vadd.s32 %v143, 127
    %v145 = vshll.u32 %v144, 23
    %v146 = vor.u32 4788187, %v145
    %v147 = vand.u32 2147483647, %v146
    %v149 = vcvt.s32.f32 %v142
    %v150 = vmul.f32 %v149, %v147
    %v151 = vxor.u32 %v150, 2147483648
    %v152 = vsel %vm31, %v151, %v150
    %v153 = vsub.s32 4, %v129
    %v154 = vsel %vm31, %v153, %v129
    %v155 = vsel %vm30, %v28, %v152
    %v156 = vsel %vm30, 0, %v154
    %v157 = vmul.f32 %v155, %v155
    %v158 = vmul.f32 %v157, -0.001358992
    %v159 = vadd.f32 %v158, 0.041655596
    %v160 = vmul.f32 %v157, %v159
    %v161 = vadd.f32 %v160, -0.4999988
    %v162 = vmul.f32 %v157, %v161
    %v163 = vadd.f32 1.0, %v162
    %v164 = vmul.f32 %v155, %v155
    %v165 = vmul.f32 %v164, -0.00019511016
    %v166 = vadd.f32 %v165, 0.008332121
    %v167 = vmul.f32 %v164, %v166
    %v168 = vadd.f32 %v167, -0.16666654
    %v169 = vmul.f32 %v164, %v168
    %v170 = vadd.f32 %v169, 1.0
    %v171 = vmul.f32 %v170, %v155
    %vm172 = vweird.f32 %v28
    %v173 = vadd.s32 %v156, 3
    %v174 = vand.u32 %v173, 3
    %vm175 = vcmp.lt.s32.totalorder %v174, 2
    %vm176 = vcmp.eq.s32.totalorder %v174, 0
    %v177 = vxor.u32 %v171, 2147483648
    %v178 = vsel %vm176, %v163, %v177
    %vm179 = vcmp.eq.s32.totalorder %v174, 2
    %v180 = vxor.u32 %v163, 2147483648
    %v181 = vsel %vm179, %v180, %v171
    %v182 = vsel %vm175, %v178, %v181
    %v183 = vsel %vm172, nan, %v182
    %vm184 = vcmask 179200
    %185 = vst.msk [vmem:[#allocation4] sm:$0xff] %vm184, %v183
    // Predicated region
    $region2: #{tpu_custom_call.1} parent=1 // pred_check
      _
    $region3: #{tpu_custom_call.1} parent=1 // pred_check_branch
      %187 = sbr.rel (0) target = $region5
    $region4: #{tpu_custom_call.1} parent=1 // pred_region
      %189 = vsyncadd [#allocation5], 0
      %s191 = sshll.u32 [#allocation4], 4
      %s192 = int_to_ptr.vmem [resolvable:$true] %s191
      %s193 = sshll.u32 %s1, 4
      %s194 = int_to_ptr.hbm [resolvable:$true] %s193
      %196 = dma.vmem_to_hbm [thread:$0]  %s192, 128, %s194, [#allocation5]
    $region5: #{tpu_custom_call.1} parent=1 // pred_fallthru
      _
    // Predicated region
    $region6: #{tpu_custom_call.1} parent=1 // pred_check
      _
    $region7: #{tpu_custom_call.1} parent=1 // pred_check_branch
      %198 = sbr.rel (0) target = $region9
    $region8: #{tpu_custom_call.1} parent=1 // pred_region
      %200 = dma.done [#allocation5], 128
    $region9: #{tpu_custom_call.1} parent=1 // pred_fallthru
      _
    %201 = vsyncpa [#allocation5], 1

</llo_original>
